<compile_context>
chip_gen: v7x
topology: tpu7x:2x2x1
jax: 0.10.0
libtpu: 0.0.40
codegen_flags: <defaults>
</compile_context>

<pallas_src>
import functools

import jax
import jax.numpy as jnp
from jax import lax
from jax.experimental import pallas as pl
from jax.experimental.pallas import tpu as pltpu

LANES = 128
ACC_ROWS = 8                       # one (8, 128) f32 vreg accumulator
CHUNK_ROWS_MAX = 64                # inner sub-chunk (8 vregs f32 per operand)
TARGET_BLOCK_BYTES = 2 * 1024 * 1024   # ~2 MiB HBM DMA per input per step
CHUNK_ELEMS = ACC_ROWS * LANES     # 1024


def _num_tensorcores() -> int:
    """Best-effort detection: 2 TensorCores only on v7x-class chips."""
    try:
        kind = jax.devices()[0].device_kind.lower()
        if "v7" in kind:
            return 2
    except Exception:
        pass
    return 1


def _mse_kernel(yp_ref, y_ref, out_ref, acc_ref, *,
                n_rows: int, tile_rows: int, tiles_per_core: int,
                chunk_rows: int, two_axis: bool):
    if two_axis:
        c = pl.program_id(0)            # "core" axis
        i = pl.program_id(1)            # reduction axis
        t = c * tiles_per_core + i      # logical (unclamped) tile index
        red_ax = 1
    else:
        i = pl.program_id(0)
        t = i
        red_ax = 0

    @pl.when(i == 0)
    def _():
        acc_ref[...] = jnp.zeros_like(acc_ref)

    row0 = t * tile_rows                # starting row of this logical tile
    n_chunks = tile_rows // chunk_rows
    unroll = min(8, n_chunks)
    zero = jnp.zeros((ACC_ROWS, LANES), jnp.float32)

    def chunk_sum(ci, masked):
        r0 = pl.multiple_of(ci * chunk_rows, chunk_rows)
        yp = yp_ref[pl.ds(r0, chunk_rows), :].astype(jnp.float32)
        yy = y_ref[pl.ds(r0, chunk_rows), :].astype(jnp.float32)
        d = yp - yy
        if masked:
            rid = (row0 + r0
                   + lax.broadcasted_iota(jnp.int32, (chunk_rows, LANES), 0))
            d = jnp.where(rid < n_rows, d, 0.0)   # select, not multiply
        sq = d * d
        return jnp.sum(sq.reshape(chunk_rows // ACC_ROWS, ACC_ROWS, LANES),
                       axis=0)

    is_full = (row0 + tile_rows) <= n_rows   # tile fully in range
    has_rows = row0 < n_rows                 # tile not fully out of range

    # Fast path: bare sub/mul/add, no mask work at all.
    @pl.when(is_full)
    def _():
        acc = lax.fori_loop(0, n_chunks,
                            lambda ci, a: a + chunk_sum(ci, masked=False),
                            zero, unroll=unroll)
        acc_ref[...] += acc

    # Masked path: only the single partial last tile ever takes this branch.
    @pl.when(jnp.logical_and(has_rows, jnp.logical_not(is_full)))
    def _():
        acc = lax.fori_loop(0, n_chunks,
                            lambda ci, a: a + chunk_sum(ci, masked=True),
                            zero, unroll=unroll)
        acc_ref[...] += acc

    # Fully out-of-range (clamped) tiles: skip the accumulate entirely.

    @pl.when(i == pl.num_programs(red_ax) - 1)
    def _():
        out_ref[...] = acc_ref[...]


def aed_loss(y_pred: jax.Array, y: jax.Array) -> jax.Array:
    """MSE (mean over all elements), matching torch.nn.MSELoss() defaults."""
    assert y_pred.shape == y.shape, "y_pred and y must have identical shapes"
    n_elems = y_pred.size

    yp_flat = jnp.ravel(y_pred)         # contiguous ravel: free bitcast
    y_flat = jnp.ravel(y)

    aligned = (n_elems // CHUNK_ELEMS) * CHUNK_ELEMS
    tail_sse = jnp.float32(0.0)

    if aligned == 0:
        # Tiny input: pad to one 1024-elem chunk; zero pads contribute 0 SSE.
        pad = CHUNK_ELEMS - n_elems
        yp_main = jnp.pad(yp_flat, (0, pad))
        y_main = jnp.pad(y_flat, (0, pad))
        aligned = CHUNK_ELEMS
    elif aligned != n_elems:
        # Kernel on the aligned prefix; the <1024-elem tail is summed in JAX
        # (avoids a full-array pad copy in HBM).
        yp_main, yp_tail = yp_flat[:aligned], yp_flat[aligned:]
        y_main, y_tail = y_flat[:aligned], y_flat[aligned:]
        dt = yp_tail.astype(jnp.float32) - y_tail.astype(jnp.float32)
        tail_sse = jnp.sum(dt * dt)
    else:
        yp_main, y_main = yp_flat, y_flat

    rows = aligned // LANES
    yp2d = yp_main.reshape(rows, LANES)
    y2d = y_main.reshape(rows, LANES)

    # Dtype-aware streaming block: ~2 MiB of DMA per input per grid step.
    itemsize = jnp.dtype(y_pred.dtype).itemsize
    tile_rows_full = max(
        CHUNK_ROWS_MAX,
        (TARGET_BLOCK_BYTES // (LANES * itemsize) // CHUNK_ROWS_MAX)
        * CHUNK_ROWS_MAX)
    tile_rows = min(tile_rows_full, rows)         # rows is a multiple of 8
    chunk_rows = CHUNK_ROWS_MAX if tile_rows % CHUNK_ROWS_MAX == 0 else ACC_ROWS

    total_tiles = pl.cdiv(rows, tile_rows)
    ncores = _num_tensorcores() if total_tiles > 1 else 1
    tiles_per_core = pl.cdiv(total_tiles, ncores)

    kernel = functools.partial(
        _mse_kernel, n_rows=rows, tile_rows=tile_rows,
        tiles_per_core=tiles_per_core, chunk_rows=chunk_rows,
        two_axis=(ncores > 1))

    if ncores > 1:
        grid = (ncores, tiles_per_core)

        def in_map(c, i):
            # Clamp so a core whose logical tile range overruns the array
            # re-reads a valid block; its contribution is skipped in-kernel.
            t = jnp.minimum(c * tiles_per_core + i, total_tiles - 1)
            return (t, 0)

        out_map = lambda c, i: (c, 0)
        dims = ("parallel", "arbitrary")
        out_rows = ncores * ACC_ROWS
    else:
        grid = (total_tiles,)
        in_map = lambda i: (i, 0)
        out_map = lambda i: (0, 0)
        dims = ("arbitrary",)
        out_rows = ACC_ROWS

    partials = pl.pallas_call(
        kernel,
        out_shape=jax.ShapeDtypeStruct((out_rows, LANES), jnp.float32),
        grid_spec=pltpu.PrefetchScalarGridSpec(
            num_scalar_prefetch=0,
            grid=grid,
            in_specs=[
                pl.BlockSpec((tile_rows, LANES), in_map),
                pl.BlockSpec((tile_rows, LANES), in_map),
            ],
            out_specs=pl.BlockSpec((ACC_ROWS, LANES), out_map),
            scratch_shapes=[pltpu.VMEM((ACC_ROWS, LANES), jnp.float32)],
        ),
        compiler_params=pltpu.CompilerParams(
            dimension_semantics=dims,
            vmem_limit_bytes=32 * 1024 * 1024,
        ),
    )(yp2d, y2d)

    sse = jnp.sum(partials) + tail_sse       # final 128-lane reduce in JAX
    return (sse / jnp.float32(n_elems)).astype(jnp.float32)


if __name__ == "__main__":
    key = jax.random.PRNGKey(0)
    k1, k2, k3, k4, k5, k6 = jax.random.split(key, 6)

    # Small prediction/target pair (tile-aligned, single grid step).
    shape = (2, 4, 16, 16)
    y_pred = jax.random.normal(k1, shape, dtype=jnp.float32)
    y = jax.random.normal(k2, shape, dtype=jnp.float32)
    loss = aed_loss(y_pred, y)
    jax.block_until_ready(loss)
    ref = jnp.mean((y_pred - y) ** 2)
    assert jnp.allclose(loss, ref, rtol=1e-5, atol=1e-6), (loss, ref)

    # Tiny ragged shape -> pad-to-one-chunk path.
    shape2 = (3, 5, 7)
    yp2 = jax.random.normal(k3, shape2, dtype=jnp.float32)
    y2 = jax.random.normal(k4, shape2, dtype=jnp.float32)
    loss2 = aed_loss(yp2, y2)
    jax.block_until_ready(loss2)
    ref2 = jnp.mean((yp2 - y2) ** 2)
    assert jnp.allclose(loss2, ref2, rtol=1e-5, atol=1e-6), (loss2, ref2)

    # Moderate shape that exercises the multi-tile grid + masked partial tile.
    shape3 = (2, 4, 256, 300)          # 614400 elems -> 4800 rows, 2 tiles
    yp3 = jax.random.normal(k5, shape3, dtype=jnp.float32)
    y3 = jax.random.normal(k6, shape3, dtype=jnp.float32)
    loss3 = aed_loss(yp3, y3)
    jax.block_until_ready(loss3)
    ref3 = jnp.mean((yp3 - y3) ** 2)
    assert jnp.allclose(loss3, ref3, rtol=1e-4, atol=1e-6), (loss3, ref3)

    print("KERNEL_OK")
</pallas_src>

<mosaic_0001>
module attributes {stable_mosaic.version = 11 : i64} {
  func.func @_mse_kernel(%arg0: i32, %arg1: memref<16x128xf32, #tpu.memory_space<vmem>>, %arg2: memref<16x128xf32, #tpu.memory_space<vmem>>, %arg3: memref<8x128xf32, #tpu.memory_space<vmem>>, %arg4: memref<8x128xf32, #tpu.memory_space<vmem>>) attributes {dimension_semantics = [#tpu.dimension_semantics<arbitrary>], iteration_bounds = array<i64: 1>, scalar_prefetch = 0 : i64, scratch_operands = 1 : i64, tpu.core_type = #tpu.core_type<tc>, window_params = [{transform_indices = @transform_0, window_bounds = array<i64: 16, 128>}, {transform_indices = @transform_1, window_bounds = array<i64: 16, 128>}, {pipeline_mode = #tpu.pipeline_mode<synchronous>, transform_indices = @transform_2, window_bounds = array<i64: 8, 128>}]} {
    %c0_i32 = arith.constant 0 : i32
    %0 = arith.cmpi eq, %arg0, %c0_i32 : i32
    %1 = arith.extui %0 : i1 to i32
    %c0_i32_0 = arith.constant 0 : i32
    %2 = arith.cmpi ne, %1, %c0_i32_0 : i32
    scf.if %2 {
      %cst_8 = arith.constant 0.000000e+00 : f32
      %17 = vector.broadcast %cst_8 : f32 to vector<8x128xf32>
      %c0 = arith.constant 0 : index
      %c0_9 = arith.constant 0 : index
      %18 = vector.load %arg4[%c0, %c0_9] : memref<8x128xf32, #tpu.memory_space<vmem>>, vector<8x128xf32>
      tpu.vector_store %arg4[%c0, %c0_9], %17 {strides = array<i32>} : memref<8x128xf32, #tpu.memory_space<vmem>>, vector<8x128xf32>,
    } else {
    }
    %c16_i32 = arith.constant 16 : i32
    %3 = arith.muli %arg0, %c16_i32 : i32
    %cst = arith.constant 0.000000e+00 : f32
    %4 = vector.broadcast %cst : f32 to vector<8x128xf32>
    %c16_i32_1 = arith.constant 16 : i32
    %5 = arith.addi %3, %c16_i32_1 : i32
    %c16_i32_2 = arith.constant 16 : i32
    %6 = arith.cmpi sle, %5, %c16_i32_2 : i32
    %c16_i32_3 = arith.constant 16 : i32
    %7 = arith.cmpi slt, %3, %c16_i32_3 : i32
    %8 = arith.extui %6 : i1 to i32
    %c0_i32_4 = arith.constant 0 : i32
    %9 = arith.cmpi ne, %8, %c0_i32_4 : i32
    scf.if %9 {
      %c0_i32_8 = arith.constant 0 : i32
      %c8_i32 = arith.constant 8 : i32
      %17 = arith.muli %c0_i32_8, %c8_i32 : i32
      %18 = tpu.assume_multiple %17, 8 : i32
      %19 = arith.index_cast %18 : i32 to index
      %c0 = arith.constant 0 : index
      %20 = vector.load %arg1[%19, %c0] : memref<16x128xf32, #tpu.memory_space<vmem>>, vector<8x128xf32>
      %21 = arith.index_cast %18 : i32 to index
      %c0_9 = arith.constant 0 : index
      %22 = vector.load %arg2[%21, %c0_9] : memref<16x128xf32, #tpu.memory_space<vmem>>, vector<8x128xf32>
      %23 = arith.subf %20, %22 : vector<8x128xf32>
      %24 = arith.mulf %23, %23 : vector<8x128xf32>
      %25 = vector.shape_cast %24 : vector<8x128xf32> to vector<1x8x128xf32>
      %cst_10 = arith.constant dense<0.000000e+00> : vector<8x128xf32>
      %26 = vector.multi_reduction <add>, %25, %cst_10 [0] : vector<1x8x128xf32> to vector<8x128xf32>
      %27 = arith.addf %4, %26 : vector<8x128xf32>
      %c1_i32 = arith.constant 1 : i32
      %c8_i32_11 = arith.constant 8 : i32
      %28 = arith.muli %c1_i32, %c8_i32_11 : i32
      %29 = tpu.assume_multiple %28, 8 : i32
      %30 = arith.index_cast %29 : i32 to index
      %c0_12 = arith.constant 0 : index
      %31 = vector.load %arg1[%30, %c0_12] : memref<16x128xf32, #tpu.memory_space<vmem>>, vector<8x128xf32>
      %32 = arith.index_cast %29 : i32 to index
      %c0_13 = arith.constant 0 : index
      %33 = vector.load %arg2[%32, %c0_13] : memref<16x128xf32, #tpu.memory_space<vmem>>, vector<8x128xf32>
      %34 = arith.subf %31, %33 : vector<8x128xf32>
      %35 = arith.mulf %34, %34 : vector<8x128xf32>
      %36 = vector.shape_cast %35 : vector<8x128xf32> to vector<1x8x128xf32>
      %cst_14 = arith.constant dense<0.000000e+00> : vector<8x128xf32>
      %37 = vector.multi_reduction <add>, %36, %cst_14 [0] : vector<1x8x128xf32> to vector<8x128xf32>
      %38 = arith.addf %27, %37 : vector<8x128xf32>
      %c2_i32 = arith.constant 2 : i32
      %c0_15 = arith.constant 0 : index
      %c0_16 = arith.constant 0 : index
      %39 = vector.load %arg4[%c0_15, %c0_16] : memref<8x128xf32, #tpu.memory_space<vmem>>, vector<8x128xf32>
      %40 = arith.addf %39, %38 : vector<8x128xf32>
      %c0_17 = arith.constant 0 : index
      %c0_18 = arith.constant 0 : index
      %41 = vector.load %arg4[%c0_17, %c0_18] : memref<8x128xf32, #tpu.memory_space<vmem>>, vector<8x128xf32>
      tpu.vector_store %arg4[%c0_17, %c0_18], %40 {strides = array<i32>} : memref<8x128xf32, #tpu.memory_space<vmem>>, vector<8x128xf32>,
    } else {
    }
    %true = arith.constant true
    %10 = arith.xori %6, %true : i1
    %11 = arith.andi %7, %10 : i1
    %12 = arith.extui %11 : i1 to i32
    %c0_i32_5 = arith.constant 0 : i32
    %13 = arith.cmpi ne, %12, %c0_i32_5 : i32
    scf.if %13 {
      %c0_i32_8 = arith.constant 0 : i32
      %c8_i32 = arith.constant 8 : i32
      %17 = arith.muli %c0_i32_8, %c8_i32 : i32
      %18 = tpu.assume_multiple %17, 8 : i32
      %19 = arith.index_cast %18 : i32 to index
      %c0 = arith.constant 0 : index
      %20 = vector.load %arg1[%19, %c0] : memref<16x128xf32, #tpu.memory_space<vmem>>, vector<8x128xf32>
      %21 = arith.index_cast %18 : i32 to index
      %c0_9 = arith.constant 0 : index
      %22 = vector.load %arg2[%21, %c0_9] : memref<16x128xf32, #tpu.memory_space<vmem>>, vector<8x128xf32>
      %23 = arith.subf %20, %22 : vector<8x128xf32>
      %24 = arith.addi %3, %18 : i32
      %25 = tpu.iota {dimensions = array<i32: 0>} : vector<8x128xi32>
      %26 = vector.broadcast %24 : i32 to vector<8x128xi32>
      %27 = arith.addi %26, %25 : vector<8x128xi32>
      %c16_i32_10 = arith.constant 16 : i32
      %28 = vector.broadcast %c16_i32_10 : i32 to vector<8x128xi32>
      %29 = arith.cmpi slt, %27, %28 : vector<8x128xi32>
      %cst_11 = arith.constant 0.000000e+00 : f32
      %30 = vector.broadcast %cst_11 : f32 to vector<8x128xf32>
      %31 = arith.select %29, %23, %30 : vector<8x128xi1>, vector<8x128xf32>
      %32 = arith.mulf %31, %31 : vector<8x128xf32>
      %33 = vector.shape_cast %32 : vector<8x128xf32> to vector<1x8x128xf32>
      %cst_12 = arith.constant dense<0.000000e+00> : vector<8x128xf32>
      %34 = vector.multi_reduction <add>, %33, %cst_12 [0] : vector<1x8x128xf32> to vector<8x128xf32>
      %35 = arith.addf %4, %34 : vector<8x128xf32>
      %c1_i32 = arith.constant 1 : i32
      %c8_i32_13 = arith.constant 8 : i32
      %36 = arith.muli %c1_i32, %c8_i32_13 : i32
      %37 = tpu.assume_multiple %36, 8 : i32
      %38 = arith.index_cast %37 : i32 to index
      %c0_14 = arith.constant 0 : index
      %39 = vector.load %arg1[%38, %c0_14] : memref<16x128xf32, #tpu.memory_space<vmem>>, vector<8x128xf32>
      %40 = arith.index_cast %37 : i32 to index
      %c0_15 = arith.constant 0 : index
      %41 = vector.load %arg2[%40, %c0_15] : memref<16x128xf32, #tpu.memory_space<vmem>>, vector<8x128xf32>
      %42 = arith.subf %39, %41 : vector<8x128xf32>
      %43 = arith.addi %3, %37 : i32
      %44 = tpu.iota {dimensions = array<i32: 0>} : vector<8x128xi32>
      %45 = vector.broadcast %43 : i32 to vector<8x128xi32>
      %46 = arith.addi %45, %44 : vector<8x128xi32>
      %c16_i32_16 = arith.constant 16 : i32
      %47 = vector.broadcast %c16_i32_16 : i32 to vector<8x128xi32>
      %48 = arith.cmpi slt, %46, %47 : vector<8x128xi32>
      %cst_17 = arith.constant 0.000000e+00 : f32
      %49 = vector.broadcast %cst_17 : f32 to vector<8x128xf32>
      %50 = arith.select %48, %42, %49 : vector<8x128xi1>, vector<8x128xf32>
      %51 = arith.mulf %50, %50 : vector<8x128xf32>
      %52 = vector.shape_cast %51 : vector<8x128xf32> to vector<1x8x128xf32>
      %cst_18 = arith.constant dense<0.000000e+00> : vector<8x128xf32>
      %53 = vector.multi_reduction <add>, %52, %cst_18 [0] : vector<1x8x128xf32> to vector<8x128xf32>
      %54 = arith.addf %35, %53 : vector<8x128xf32>
      %c2_i32 = arith.constant 2 : i32
      %c0_19 = arith.constant 0 : index
      %c0_20 = arith.constant 0 : index
      %55 = vector.load %arg4[%c0_19, %c0_20] : memref<8x128xf32, #tpu.memory_space<vmem>>, vector<8x128xf32>
      %56 = arith.addf %55, %54 : vector<8x128xf32>
      %c0_21 = arith.constant 0 : index
      %c0_22 = arith.constant 0 : index
      %57 = vector.load %arg4[%c0_21, %c0_22] : memref<8x128xf32, #tpu.memory_space<vmem>>, vector<8x128xf32>
      tpu.vector_store %arg4[%c0_21, %c0_22], %56 {strides = array<i32>} : memref<8x128xf32, #tpu.memory_space<vmem>>, vector<8x128xf32>,
    } else {
    }
    %c0_i32_6 = arith.constant 0 : i32
    %14 = arith.cmpi eq, %arg0, %c0_i32_6 : i32
    %15 = arith.extui %14 : i1 to i32
    %c0_i32_7 = arith.constant 0 : i32
    %16 = arith.cmpi ne, %15, %c0_i32_7 : i32
    scf.if %16 {
      %c0 = arith.constant 0 : index
      %c0_8 = arith.constant 0 : index
      %17 = vector.load %arg4[%c0, %c0_8] : memref<8x128xf32, #tpu.memory_space<vmem>>, vector<8x128xf32>
      %c0_9 = arith.constant 0 : index
      %c0_10 = arith.constant 0 : index
      %18 = vector.load %arg3[%c0_9, %c0_10] : memref<8x128xf32, #tpu.memory_space<vmem>>, vector<8x128xf32>
      tpu.vector_store %arg3[%c0_9, %c0_10], %17 {strides = array<i32>} : memref<8x128xf32, #tpu.memory_space<vmem>>, vector<8x128xf32>,
    } else {
    }
    return
  }
  func.func @transform_0(%arg0: i32) -> (i32, i32) {
    %c0_i32 = arith.constant 0 : i32
    %c0_i32_0 = arith.constant 0 : i32
    return %arg0, %c0_i32 : i32, i32
  }
  func.func @transform_1(%arg0: i32) -> (i32, i32) {
    %c0_i32 = arith.constant 0 : i32
    %c0_i32_0 = arith.constant 0 : i32
    return %arg0, %c0_i32 : i32, i32
  }
  func.func @transform_2(%arg0: i32) -> (i32, i32) {
    %c0_i32 = arith.constant 0 : i32
    %c0_i32_0 = arith.constant 0 : i32
    %c0_i32_1 = arith.constant 0 : i32
    return %c0_i32, %c0_i32_0 : i32, i32
  }
}

</mosaic_0001>

<llo_original>
// kernel: tpu_custom_call.1
$region0: #{tpu_custom_call.1}
  #allocation0 [shape = 'u32[]', space=smem, size = 0x4, offset = 0x4, fixed_abs, tag = 'smem constant byte address 0x4 - core index']
  #allocation1 [shape = 'u32[144,128]{1,0:T(1,128)}', space=vmem, size = 0x12000, scoped, tag = 'internal scratch']
  #allocation2 [shape = 'f32[8,128]{1,0:T(8,128)}', space=vmem, size = 0x1000, scoped, tag = 'scratch operand']
  %s0 = inlined_call_operand.hbm [shape: f32[16,128], index: 0, kind: input, shape index: {}]
  %s1 = inlined_call_operand.hbm [shape: f32[16,128], index: 1, kind: input, shape index: {}]
  %s2 = inlined_call_operand.hbm [shape: f32[8,128], index: 2, kind: output, shape index: {}]
  %s3 = sld [smem:[#allocation0]]
  $region42: #{tpu_custom_call.1} parent=0
    _
  %s5 = ssub.s32 1, %s3
  %s6 = scalar_select 0, %s5, %s3
  $region1: #{tpu_custom_call.1} parent=0
    #allocation3 [shape = 'u8[8192]{0}', space=vmem, size = 0x2000, scoped, tag = 'input window, operand 0, single buffered']
    #allocation4 [shape = 's32[1]{0}', space=sflag, size = 0x4, scoped, tag = 'scoped memory for tpu_custom_call.1']
    #allocation5 [shape = 's32[1]{0}', space=sflag, size = 0x4, scoped, tag = 'scoped memory for tpu_custom_call.1']
    #allocation6 [shape = 'u8[8192]{0}', space=vmem, size = 0x2000, scoped, tag = 'input window, operand 1, single buffered']
    #allocation7 [shape = 's32[1]{0}', space=sflag, size = 0x4, scoped, tag = 'scoped memory for tpu_custom_call.1']
    #allocation8 [shape = 'u8[4096]{0}', space=vmem, size = 0x1000, scoped, tag = 'output window, operand 0, single buffered']
    %7 = vsyncpa [#allocation4], 0
    %8 = vsyncpa [#allocation7], 0
    %9 = vsyncpa [#allocation5], 0
    // Predicated region
    $region2: #{tpu_custom_call.1} parent=1 // pred_check
      _
    $region3: #{tpu_custom_call.1} parent=1 // pred_check_branch
      %11 = sbr.rel (0) target = $region5
    $region4: #{tpu_custom_call.1} parent=1 // pred_region
      %s13 = ssub.s32 256, 256
      %14 = vsyncadd [#allocation4], %s13
      %s15 = sshll.u32 [#allocation3], 4
      %s16 = int_to_ptr.vmem [resolvable:$true] %s15
      %21 = dma.hbm_to_vmem [thread:$0]  %s0, 256, %s16, [#allocation4], 128, 128, 8
    $region5: #{tpu_custom_call.1} parent=1 // pred_fallthru
      _
    // Predicated region
    $region6: #{tpu_custom_call.1} parent=1 // pred_check
      _
    $region7: #{tpu_custom_call.1} parent=1 // pred_check_branch
      %23 = sbr.rel (0) target = $region9
    $region8: #{tpu_custom_call.1} parent=1 // pred_region
      %s25 = ssub.s32 256, 256
      %26 = vsyncadd [#allocation7], %s25
      %s27 = sshll.u32 [#allocation6], 4
      %s28 = int_to_ptr.vmem [resolvable:$true] %s27
      %33 = dma.hbm_to_vmem [thread:$0]  %s1, 256, %s28, [#allocation7], 128, 128, 8
    $region9: #{tpu_custom_call.1} parent=1 // pred_fallthru
      _
    // Predicated region
    $region10: #{tpu_custom_call.1} parent=1 // pred_check
      _
    $region11: #{tpu_custom_call.1} parent=1 // pred_check_branch
      %35 = sbr.rel (0) target = $region13
    $region12: #{tpu_custom_call.1} parent=1 // pred_region
      %36 = dma.done [#allocation4], 256
    $region13: #{tpu_custom_call.1} parent=1 // pred_fallthru
      _
    // Predicated region
    $region14: #{tpu_custom_call.1} parent=1 // pred_check
      _
    $region15: #{tpu_custom_call.1} parent=1 // pred_check_branch
      %38 = sbr.rel (0) target = $region17
    $region16: #{tpu_custom_call.1} parent=1 // pred_region
      %39 = dma.done [#allocation7], 256
    $region17: #{tpu_custom_call.1} parent=1 // pred_fallthru
      _
    %p40 = scmp.eq.s32.totalorder 0, 0
    // Predicated region
    $region18: #{tpu_custom_call.1} parent=1 // pred_check
      %p41 = pneg %p40
    $region19: #{tpu_custom_call.1} parent=1 // pred_check_branch
      %43 = sbr.rel (%p41) target = $region21
    $region20: #{tpu_custom_call.1} parent=1 // pred_region
      %44 = vst [vmem:[#allocation2] sm:$0xff] 0.0
    $region21: #{tpu_custom_call.1} parent=1 // pred_fallthru
      _
    %s45 = smul.u32 0, 16
    %s46 = sadd.s32 %s45, 16
    %p47 = scmp.le.s32.totalorder %s46, 16
    %p48 = scmp.lt.s32.totalorder %s45, 16
    // Predicated region
    $region22: #{tpu_custom_call.1} parent=1 // pred_check
      %p49 = pneg %p47
    $region23: #{tpu_custom_call.1} parent=1 // pred_check_branch
      %51 = sbr.rel (%p49) target = $region25
    $region24: #{tpu_custom_call.1} parent=1 // pred_region
      %v52 = vld [vmem:[#allocation3] sm:$0xff]
      %v53 = vld [vmem:[#allocation6] sm:$0xff]
      %v54 = vsub.f32 %v52, %v53
      %v55 = vmul.f32 %v54, %v54
      %v56 = vadd.f32 %v55, 0.0
      %v57 = vadd.f32 %v56, 0.0
      %s58 = scalar_lea.vmem [#allocation3], 8
      %v59 = vld [vmem:[%s58] sm:$0xff]
      %s60 = scalar_lea.vmem [#allocation6], 8
      %v61 = vld [vmem:[%s60] sm:$0xff]
      %v62 = vsub.f32 %v59, %v61
      %v63 = vmul.f32 %v62, %v62
      %v64 = vadd.f32 %v63, 0.0
      %v65 = vadd.f32 %v57, %v64
      %v66 = vld [vmem:[#allocation2] sm:$0xff]
      %v67 = vadd.f32 %v66, %v65
      %68 = vst [vmem:[#allocation2] sm:$0xff] %v67
    $region25: #{tpu_custom_call.1} parent=1 // pred_fallthru
      _
    %p69 = scmp.gt.s32.totalorder %s46, 16
    %p70 = pnand %p48, %p69
    %p71 = pneg %p70
    // Predicated region
    $region26: #{tpu_custom_call.1} parent=1 // pred_check
      _
    $region27: #{tpu_custom_call.1} parent=1 // pred_check_branch
      %73 = sbr.rel (%p70) target = $region29
    $region28: #{tpu_custom_call.1} parent=1 // pred_region
      %v74 = vld [vmem:[#allocation3] sm:$0xff]
      %v75 = vld [vmem:[#allocation6] sm:$0xff]
      %v76 = vsub.f32 %v74, %v75
      %s77 = sadd.s32 %s45, 0
      %v78 = vlaneseq
      %v79 = vshrl.u32 %v78, 7
      %v80 = vstv %s77
      %v81 = vadd.s32 %v80, %v79
      %vm82 = vcmp.lt.s32.totalorder %v81, 16
      %v83 = vsel %vm82, %v76, 0.0
      %v84 = vmul.f32 %v83, %v83
      %v85 = vadd.f32 %v84, 0.0
      %v86 = vadd.f32 %v85, 0.0
      %s87 = scalar_lea.vmem [#allocation3], 8
      %v88 = vld [vmem:[%s87] sm:$0xff]
      %s89 = scalar_lea.vmem [#allocation6], 8
      %v90 = vld [vmem:[%s89] sm:$0xff]
      %v91 = vsub.f32 %v88, %v90
      %s92 = sadd.s32 %s45, 8
      %v93 = vstv %s92
      %v94 = vadd.s32 %v93, %v79
      %vm95 = vcmp.lt.s32.totalorder %v94, 16
      %v96 = vsel %vm95, %v91, 0.0
      %v97 = vmul.f32 %v96, %v96
      %v98 = vadd.f32 %v97, 0.0
      %v99 = vadd.f32 %v86, %v98
      %v100 = vld [vmem:[#allocation2] sm:$0xff]
      %v101 = vadd.f32 %v100, %v99
      %102 = vst [vmem:[#allocation2] sm:$0xff] %v101
    $region29: #{tpu_custom_call.1} parent=1 // pred_fallthru
      _
    // Predicated region
    $region30: #{tpu_custom_call.1} parent=1 // pred_check
      %p103 = pneg %p40
    $region31: #{tpu_custom_call.1} parent=1 // pred_check_branch
      %105 = sbr.rel (%p103) target = $region33
    $region32: #{tpu_custom_call.1} parent=1 // pred_region
      %v106 = vld [vmem:[#allocation2] sm:$0xff]
      %107 = vst [vmem:[#allocation8] sm:$0xff] %v106
    $region33: #{tpu_custom_call.1} parent=1 // pred_fallthru
      _
    // Predicated region
    $region34: #{tpu_custom_call.1} parent=1 // pred_check
      _
    $region35: #{tpu_custom_call.1} parent=1 // pred_check_branch
      %109 = sbr.rel (0) target = $region37
    $region36: #{tpu_custom_call.1} parent=1 // pred_region
      %s111 = ssub.s32 128, 128
      %112 = vsyncadd [#allocation5], %s111
      %s114 = sshll.u32 [#allocation8], 4
      %s115 = int_to_ptr.vmem [resolvable:$true] %s114
      %117 = dma.vmem_to_hbm [thread:$0]  %s115, 128, %s2, [#allocation5]
    $region37: #{tpu_custom_call.1} parent=1 // pred_fallthru
      _
    // Predicated region
    $region38: #{tpu_custom_call.1} parent=1 // pred_check
      _
    $region39: #{tpu_custom_call.1} parent=1 // pred_check_branch
      %119 = sbr.rel (0) target = $region41
    $region40: #{tpu_custom_call.1} parent=1 // pred_region
      %120 = dma.done [#allocation5], 128
    $region41: #{tpu_custom_call.1} parent=1 // pred_fallthru
      _
    %121 = vsyncpa [#allocation4], 1
    %122 = vsyncpa [#allocation7], 1
    %123 = vsyncpa [#allocation5], 1

</llo_original>
